<compile_context>
chip_gen: v7x
topology: tpu7x:2x2x1
jax: 0.10.0
libtpu: 0.0.40
codegen_flags: <defaults>
</compile_context>

<pallas_src>
import functools
import math

import jax
import jax.numpy as jnp
from jax.experimental import pallas as pl
from jax.experimental.pallas import tpu as pltpu


# ----------------------------------------------------------------------------
# Parameter / buffer setup (plain JAX — mirrors PositionalEncoding.__init__)
# ----------------------------------------------------------------------------
def make_pe_table(max_len: int, d_model: int) -> jnp.ndarray:
    """(max_len, d_model) sinusoidal table; also handles odd d_model safely."""
    position = jnp.arange(max_len, dtype=jnp.float32)[:, None]              # (max_len, 1)
    div_term = jnp.exp(
        jnp.arange(0, d_model, 2, dtype=jnp.float32) * (-math.log(10000.0) / d_model)
    )                                                                        # (ceil(d/2),)
    angles = position * div_term                                             # (max_len, ceil(d/2))
    pe = jnp.zeros((max_len, d_model), dtype=jnp.float32)
    pe = pe.at[:, 0::2].set(jnp.sin(angles)[:, : (d_model + 1) // 2])
    pe = pe.at[:, 1::2].set(jnp.cos(angles)[:, : d_model // 2])
    return pe


# ----------------------------------------------------------------------------
# Pallas kernel: lane-dense streaming add of the positional table onto x
# ----------------------------------------------------------------------------
def _pe_add_kernel(x_ref, pe_ref, o_ref, *, batch: int, d_model: int):
    # x_ref / o_ref : (ts, batch * d_model)  lane-dense tile
    # pe_ref        : (ts, d_model)          matching rows of the pe table
    pe = pe_ref[...].astype(jnp.float32)  # loaded once per tile, reused for every batch slice
    for b in range(batch):                # static unroll -> zero-cost ref views, aligned stores
        sl = slice(b * d_model, (b + 1) * d_model)
        o_ref[:, sl] = (x_ref[:, sl].astype(jnp.float32) + pe).astype(o_ref.dtype)


def _choose_seq_tile(s_pad: int, bd: int, d: int, itemsize: int,
                     *, vmem_budget_bytes: int = 16 * 1024 * 1024,
                     max_tile_rows: int = 2048, min_grid: int = 4) -> int:
    """Largest multiple-of-8 row tile fitting the VMEM budget, keeping >=min_grid steps."""
    # Double-buffered x-in block + out block + pe block per row of the tile.
    bytes_per_row = 2 * (2 * bd + d) * itemsize
    ts = min(s_pad, max_tile_rows, max(8, vmem_budget_bytes // bytes_per_row))
    # Keep at least `min_grid` grid steps when there is enough work (v7x: 2 TCs).
    if pl.cdiv(s_pad, ts) < min_grid and s_pad >= min_grid * 8:
        ts = pl.cdiv(s_pad, min_grid)
    ts = max(8, (ts // 8) * 8)  # multiple of 8 sublanes
    return ts


def positional_encoding_forward(x: jnp.ndarray, pe_table: jnp.ndarray) -> jnp.ndarray:
    """x: (S, B, D);  pe_table: (max_len, D).  Returns x + pe[:S] (eval-mode dropout)."""
    S, B, D = x.shape
    max_len, d_pe = pe_table.shape
    assert d_pe == D, "pe table d_model mismatch"
    assert S <= max_len, "sequence longer than max_len"
    BD = B * D

    # Lane-dense 2-D view; contiguous collapse, free under jit.
    x2 = x.reshape(S, BD)

    # Pad rows up to a multiple of 8 so blocks satisfy the (8, 128) constraint
    # for arbitrary sequence lengths (tail rows are sliced off afterwards).
    S_pad = 8 * pl.cdiv(S, 8)
    if S_pad != S:
        x2 = jnp.pad(x2, ((0, S_pad - S), (0, 0)))

    ts = _choose_seq_tile(S_pad, BD, D, jnp.dtype(x.dtype).itemsize)
    grid = (pl.cdiv(S_pad, ts),)

    out2 = pl.pallas_call(
        functools.partial(_pe_add_kernel, batch=B, d_model=D),
        out_shape=jax.ShapeDtypeStruct((S_pad, BD), x.dtype),
        grid_spec=pltpu.PrefetchScalarGridSpec(
            num_scalar_prefetch=0,
            grid=grid,
            in_specs=[
                pl.BlockSpec((ts, BD), lambda i: (i, 0)),   # x rows
                pl.BlockSpec((ts, D), lambda i: (i, 0)),    # pe rows straight from full table
            ],
            out_specs=pl.BlockSpec((ts, BD), lambda i: (i, 0)),
        ),
        compiler_params=pltpu.CompilerParams(
            dimension_semantics=("parallel",),
            vmem_limit_bytes=32 * 1024 * 1024,  # explicit, with headroom for v7x's 64 MiB VMEM
        ),
    )(x2, pe_table)

    if S_pad != S:
        out2 = out2[:S]
    return out2.reshape(S, B, D)


# ----------------------------------------------------------------------------
# Pure-JAX reference for correctness checks
# ----------------------------------------------------------------------------
def _reference(x, pe_table):
    S = x.shape[0]
    return x + pe_table[:S][:, None, :]


if __name__ == "__main__":
    # Small shapes consistent with the module's forward: (seq, batch, d_model)
    max_len = 4096  # module default
    d_model = 128
    batch = 2

    pe_table = make_pe_table(max_len, d_model)
    fwd = jax.jit(positional_encoding_forward)

    key = jax.random.PRNGKey(0)
    k0, k1 = jax.random.split(key)

    # Primary check: lane-dense case, seq a multiple of 8 -> grid of 2 parallel steps.
    x = jax.random.normal(k0, (16, batch, d_model), dtype=jnp.float32)
    out = jax.block_until_ready(fwd(x, pe_table))
    ref = _reference(x, pe_table)
    assert out.shape == x.shape and out.dtype == x.dtype
    assert jnp.allclose(out, ref, atol=1e-6, rtol=1e-6), "mismatch vs reference (S=16)"

    # Tail handling: seq not a multiple of 8 (exercises cdiv grid + row padding).
    x_odd = jax.random.normal(k1, (12, batch, d_model), dtype=jnp.float32)
    out_odd = jax.block_until_ready(fwd(x_odd, pe_table))
    ref_odd = _reference(x_odd, pe_table)
    assert jnp.allclose(out_odd, ref_odd, atol=1e-6, rtol=1e-6), "mismatch vs reference (S=12)"

    print("KERNEL_OK")
</pallas_src>

<mosaic_0001>
module attributes {stable_mosaic.version = 11 : i64} {
  func.func @_pe_add_kernel(%arg0: i32, %arg1: memref<16x256xf32, #tpu.memory_space<vmem>>, %arg2: memref<16x128xf32, #tpu.memory_space<vmem>>, %arg3: memref<16x256xf32, #tpu.memory_space<vmem>>) attributes {dimension_semantics = [#tpu.dimension_semantics<parallel>], iteration_bounds = array<i64: 1>, scalar_prefetch = 0 : i64, scratch_operands = 0 : i64, tpu.core_type = #tpu.core_type<tc>, window_params = [{transform_indices = @transform_0, window_bounds = array<i64: 16, 256>}, {transform_indices = @transform_1, window_bounds = array<i64: 16, 128>}, {transform_indices = @transform_2, window_bounds = array<i64: 16, 256>}]} {
    %c0 = arith.constant 0 : index
    %c0_0 = arith.constant 0 : index
    %0 = vector.load %arg2[%c0, %c0_0] : memref<16x128xf32, #tpu.memory_space<vmem>>, vector<16x128xf32>
    %c0_1 = arith.constant 0 : index
    %c0_2 = arith.constant 0 : index
    %1 = vector.load %arg1[%c0_1, %c0_2] : memref<16x256xf32, #tpu.memory_space<vmem>>, vector<16x128xf32>
    %2 = arith.addf %1, %0 : vector<16x128xf32>
    %c0_3 = arith.constant 0 : index
    %c0_4 = arith.constant 0 : index
    %3 = vector.load %arg3[%c0_3, %c0_4] : memref<16x256xf32, #tpu.memory_space<vmem>>, vector<16x128xf32>
    tpu.vector_store %arg3[%c0_3, %c0_4], %2 {strides = array<i32>} : memref<16x256xf32, #tpu.memory_space<vmem>>, vector<16x128xf32>,
    %c0_5 = arith.constant 0 : index
    %c128 = arith.constant 128 : index
    %4 = vector.load %arg1[%c0_5, %c128] : memref<16x256xf32, #tpu.memory_space<vmem>>, vector<16x128xf32>
    %5 = arith.addf %4, %0 : vector<16x128xf32>
    %c0_6 = arith.constant 0 : index
    %c128_7 = arith.constant 128 : index
    %6 = vector.load %arg3[%c0_6, %c128_7] : memref<16x256xf32, #tpu.memory_space<vmem>>, vector<16x128xf32>
    tpu.vector_store %arg3[%c0_6, %c128_7], %5 {strides = array<i32>} : memref<16x256xf32, #tpu.memory_space<vmem>>, vector<16x128xf32>,
    return
  }
  func.func @transform_0(%arg0: i32) -> (i32, i32) {
    %c0_i32 = arith.constant 0 : i32
    %c0_i32_0 = arith.constant 0 : i32
    return %arg0, %c0_i32 : i32, i32
  }
  func.func @transform_1(%arg0: i32) -> (i32, i32) {
    %c0_i32 = arith.constant 0 : i32
    %c0_i32_0 = arith.constant 0 : i32
    return %arg0, %c0_i32 : i32, i32
  }
  func.func @transform_2(%arg0: i32) -> (i32, i32) {
    %c0_i32 = arith.constant 0 : i32
    %c0_i32_0 = arith.constant 0 : i32
    return %arg0, %c0_i32 : i32, i32
  }
}

</mosaic_0001>

<llo_original>
// kernel: positional_encoding_forward.1
$region0: #{positional_encoding_forward.1}
  #allocation0 [shape = 'u32[]', space=smem, size = 0x4, offset = 0x4, fixed_abs, tag = 'smem constant byte address 0x4 - core index']
  #allocation1 [shape = 'u32[144,128]{1,0:T(1,128)}', space=vmem, size = 0x12000, scoped, tag = 'internal scratch']
  %s0 = inlined_call_operand.vmem [shape: f32[16,256], index: 0, kind: input, shape index: {}]
  %s1 = inlined_call_operand.hbm [shape: f32[4096,128], index: 1, kind: input, shape index: {}]
  %s2 = inlined_call_operand.vmem [shape: f32[16,256], index: 2, kind: output, shape index: {}]
  %s3 = sld [smem:[#allocation0]]
  $region22: #{positional_encoding_forward.1} parent=0
    _
  %s5 = ssub.s32 1, %s3
  %s6 = scalar_select 0, %s5, %s3
  $region1: #{positional_encoding_forward.1} parent=0
    #allocation2 [shape = 'u8[8192]{0}', space=vmem, size = 0x2000, scoped, tag = 'input window, operand 1, single buffered']
    #allocation3 [shape = 's32[1]{0}', space=sflag, size = 0x4, scoped, tag = 'scoped memory for positional_encoding_forward.1']
    %7 = vsyncpa [#allocation3], 0
    // Predicated region
    $region2: #{positional_encoding_forward.1} parent=1 // pred_check
      _
    $region3: #{positional_encoding_forward.1} parent=1 // pred_check_branch
      %9 = sbr.rel (0) target = $region5
    $region4: #{positional_encoding_forward.1} parent=1 // pred_region
      _
    $region5: #{positional_encoding_forward.1} parent=1 // pred_fallthru
      _
    // Predicated region
    $region6: #{positional_encoding_forward.1} parent=1 // pred_check
      _
    $region7: #{positional_encoding_forward.1} parent=1 // pred_check_branch
      %11 = sbr.rel (0) target = $region9
    $region8: #{positional_encoding_forward.1} parent=1 // pred_region
      %s13 = ssub.s32 256, 256
      %14 = vsyncadd [#allocation3], %s13
      %s15 = sshll.u32 [#allocation2], 4
      %s16 = int_to_ptr.vmem [resolvable:$true] %s15
      %21 = dma.hbm_to_vmem [thread:$0]  %s1, 256, %s16, [#allocation3], 128, 128, 8
    $region9: #{positional_encoding_forward.1} parent=1 // pred_fallthru
      _
    // Predicated region
    $region10: #{positional_encoding_forward.1} parent=1 // pred_check
      _
    $region11: #{positional_encoding_forward.1} parent=1 // pred_check_branch
      %23 = sbr.rel (0) target = $region13
    $region12: #{positional_encoding_forward.1} parent=1 // pred_region
      %24 = dma.done [#allocation3], 256
    $region13: #{positional_encoding_forward.1} parent=1 // pred_fallthru
      _
    %v25 = vld [vmem:[#allocation2] sm:$0xff]
    %v26 = vld [vmem:[#allocation2 + $0x8] sm:$0xff]
    %v27 = vld [vmem:[%s0] sm:$0xff]
    %v28 = vld [vmem:[%s0 + $0x10] sm:$0xff]
    %v29 = vadd.f32 %v27, %v25
    %v30 = vadd.f32 %v28, %v26
    %31 = vst [vmem:[%s2] sm:$0xff] %v29
    %32 = vst [vmem:[%s2 + $0x10] sm:$0xff] %v30
    %v33 = vld [vmem:[%s0 + $0x8] sm:$0xff]
    %v34 = vld [vmem:[%s0 + $0x18] sm:$0xff]
    %v35 = vadd.f32 %v33, %v25
    %v36 = vadd.f32 %v34, %v26
    %37 = vst [vmem:[%s2 + $0x8] sm:$0xff] %v35
    %38 = vst [vmem:[%s2 + $0x18] sm:$0xff] %v36
    // Predicated region
    $region14: #{positional_encoding_forward.1} parent=1 // pred_check
      _
    $region15: #{positional_encoding_forward.1} parent=1 // pred_check_branch
      %40 = sbr.rel (0) target = $region17
    $region16: #{positional_encoding_forward.1} parent=1 // pred_region
      _
    $region17: #{positional_encoding_forward.1} parent=1 // pred_fallthru
      _
    // Predicated region
    $region18: #{positional_encoding_forward.1} parent=1 // pred_check
      _
    $region19: #{positional_encoding_forward.1} parent=1 // pred_check_branch
      %42 = sbr.rel (0) target = $region21
    $region20: #{positional_encoding_forward.1} parent=1 // pred_region
      _
    $region21: #{positional_encoding_forward.1} parent=1 // pred_fallthru
      _
    %43 = vsyncpa [#allocation3], 1

</llo_original>
